<compile_context>
chip_gen: v5e
topology: v5e:2x2
jax: 0.10.0
libtpu: 0.0.40
codegen_flags: <defaults>
</compile_context>

<pallas_src>
import jax
import jax.numpy as jnp
from jax.experimental import pallas as pl
from jax.experimental.pallas import tpu as pltpu


def _fused_affine_kernel(code_ref, wct_ref, bc_ref, out_ref):
    # code_ref: [TB, V], wct_ref: [O, V], bc_ref: [O, 1], out_ref: [O, TB]
    # Contract over V with the batch tile as the (transposed) rhs -> lane-dense
    # [O, TB] result; accumulate in f32.
    acc = jax.lax.dot_general(
        wct_ref[...], code_ref[...],
        dimension_numbers=(((1,), (1,)), ((), ())),   # WcT[o,v] * code[b,v] -> [o,b]
        preferred_element_type=jnp.float32,
    )
    out_ref[...] = (acc + bc_ref[...]).astype(out_ref.dtype)


def fuse_params(params):
    """Fold encoder1 + decoder2 into one affine map.

    Exact (up to fp32 summation order) because there is no activation between
    the two Linears in the reference forward.  Call ONCE at parameter-prep
    time, not per forward call.
    """
    w1, b1 = params["encoder1_w"], params["encoder1_b"]    # [H, V], [H]
    w2, b2 = params["decoder2_w"], params["decoder2_b"]    # [O, H], [O]
    wct = w2 @ w1                                          # [O, V]
    bc = (w2 @ b1 + b2).reshape(-1, 1)                     # [O, 1]
    return {"wct": wct, "bc": bc}


def _pick_max_tile():
    """Generation-aware batch tile, budgeted WITH the 4x lane padding.

    A [TB, V<=128] f32 tile lane-pads to [TB, 128] in VMEM: 512*TB bytes per
    buffer, x2 for double buffering.
      TB=8192  ->  8 MiB  (fits v5e's 16 MiB scoped-VMEM default)
      TB=16384 -> 16 MiB  (fits v6e/v7x's 32 MiB scoped-VMEM default)
    """
    try:
        kind = jax.devices()[0].device_kind.lower()
    except Exception:
        return 8192
    if "v6" in kind or "v7" in kind:
        return 16384
    return 8192


def _batch_dim_semantics():
    """Shard the batch grid axis across both TensorCores on v7x."""
    try:
        kind = jax.devices()[0].device_kind.lower()
    except Exception:
        return ("parallel",)
    if "v7" in kind:
        return (pltpu.CORE_PARALLEL,)
    return ("parallel",)


def nn_classifier_semantic_forward(
    code,
    struct,
    fused_params,
    *,
    max_tile=None,
    compute_dtype=None,
    transpose_output=True,
    small_batch_threshold=1024,
    force_pallas=False,
):
    """Pallas implementation of NNClassifier_Semantic.forward.

    `struct` is accepted for API parity but (matching PyTorch) unused.
    `fused_params` comes from `fuse_params(...)` (computed once offline).
    """
    del struct  # unused in the reference forward pass

    wct = fused_params["wct"]                              # [O, V]
    bc = fused_params["bc"]                                # [O, 1]

    B, V = code.shape
    O = wct.shape[0]
    out_dtype = code.dtype

    if compute_dtype is not None:
        # HBM-read-bound on `code`: halving bytes read is ~2x wall-clock.
        code = code.astype(compute_dtype)
        wct = wct.astype(compute_dtype)

    # Small-batch fast path: below one grid step of useful work, pallas_call
    # dispatch + pipeline prologue dominates; let XLA's fused dot handle it.
    if (not force_pallas) and B < small_batch_threshold:
        out_t = jnp.dot(wct, code.T, preferred_element_type=jnp.float32) + bc
        out_t = out_t.astype(out_dtype)
        return out_t.T if transpose_output else out_t

    if max_tile is None:
        max_tile = _pick_max_tile()

    # Full-batch block when it fits (full-array dims are exempt from the
    # (8,128) rule); otherwise a max_tile-row tile (multiple of 8 and 128).
    TB = B if B <= max_tile else max_tile
    grid = (pl.cdiv(B, TB),)

    out_t = pl.pallas_call(
        _fused_affine_kernel,
        out_shape=jax.ShapeDtypeStruct((O, B), out_dtype),
        grid=grid,
        in_specs=[
            pl.BlockSpec((TB, V), lambda i: (i, 0)),       # batch-tiled input
            pl.BlockSpec((O, V), lambda i: (0, 0)),        # fused weight, resident
            pl.BlockSpec((O, 1), lambda i: (0, 0)),        # fused bias, resident
        ],
        out_specs=pl.BlockSpec((O, TB), lambda i: (0, i)), # lane-dense output tile
        compiler_params=pltpu.CompilerParams(
            dimension_semantics=_batch_dim_semantics()),
    )(code, wct, bc)

    # Restore PyTorch layout [B, O] unless the consumer accepts [O, B].
    return out_t.T if transpose_output else out_t


def init_params(key, vec_size, hidden_size=16):
    """Deterministic synthetic init matching nn.Linear parameter shapes."""
    k1, k2, k3, k4, k5, k6, k7, k8 = jax.random.split(key, 8)

    def linear(kw, kb, fan_in, fan_out):
        bound = 1.0 / jnp.sqrt(fan_in)
        w = jax.random.uniform(kw, (fan_out, fan_in), jnp.float32, -bound, bound)
        b = jax.random.uniform(kb, (fan_out,), jnp.float32, -bound, bound)
        return w, b

    e1w, e1b = linear(k1, k2, vec_size, hidden_size)          # encoder1
    e2w, e2b = linear(k3, k4, 11, hidden_size)                # encoder2 (unused)
    dw, db = linear(k5, k6, 2 * hidden_size, 2)               # decoder  (unused)
    d2w, d2b = linear(k7, k8, hidden_size, 2)                 # decoder2
    return {
        "encoder1_w": e1w, "encoder1_b": e1b,
        "encoder2_w": e2w, "encoder2_b": e2b,
        "decoder_w": dw, "decoder_b": db,
        "decoder2_w": d2w, "decoder2_b": d2b,
    }


def _reference(code, params):
    # Un-fused reference, matching the PyTorch module exactly.
    h = code @ params["encoder1_w"].T + params["encoder1_b"]
    return h @ params["decoder2_w"].T + params["decoder2_b"]


if __name__ == "__main__":
    key = jax.random.PRNGKey(0)
    k_code, k_struct, k_code2, k_params = jax.random.split(key, 4)

    vec_size, hidden_size = 32, 16
    params = init_params(k_params, vec_size, hidden_size)
    fused = fuse_params(params)   # hoisted: computed once, not per call

    # 1) Small demo batch, forced through the Pallas path (full-array block).
    batch = 8
    code = jax.random.normal(k_code, (batch, vec_size), jnp.float32)
    struct = jax.random.normal(k_struct, (batch, 11), jnp.float32)  # unused
    out = nn_classifier_semantic_forward(code, struct, fused, force_pallas=True)
    out = jax.block_until_ready(out)
    ref = _reference(code, params)
    assert out.shape == (batch, 2)
    assert jnp.allclose(out, ref, atol=1e-5, rtol=1e-5), "mismatch vs reference (small)"

    # 2) Ragged batch with a small tile cap to exercise the grid loop and the
    #    masked partial final tile (640 rows = 2.5 tiles of 256).
    batch2 = 640
    code2 = jax.random.normal(k_code2, (batch2, vec_size), jnp.float32)
    out2 = nn_classifier_semantic_forward(
        code2, None, fused, max_tile=256, force_pallas=True)
    out2 = jax.block_until_ready(out2)
    ref2 = _reference(code2, params)
    assert out2.shape == (batch2, 2)
    assert jnp.allclose(out2, ref2, atol=1e-5, rtol=1e-5), "mismatch vs reference (tiled)"

    print("KERNEL_OK")
</pallas_src>

<mosaic_0001>
module attributes {stable_mosaic.version = 11 : i64} {
  func.func @_fused_affine_kernel(%arg0: i32, %arg1: memref<8x32xf32, #tpu.memory_space<vmem>>, %arg2: memref<2x32xf32, #tpu.memory_space<vmem>>, %arg3: memref<2x1xf32, #tpu.memory_space<vmem>>, %arg4: memref<2x8xf32, #tpu.memory_space<vmem>>) attributes {dimension_semantics = [#tpu.dimension_semantics<parallel>], iteration_bounds = array<i64: 1>, scalar_prefetch = 0 : i64, scratch_operands = 0 : i64, tpu.core_type = #tpu.core_type<tc>, window_params = [{transform_indices = @transform_0, window_bounds = array<i64: 8, 32>}, {pipeline_mode = #tpu.pipeline_mode<synchronous>, transform_indices = @transform_1, window_bounds = array<i64: 2, 32>}, {pipeline_mode = #tpu.pipeline_mode<synchronous>, transform_indices = @transform_2, window_bounds = array<i64: 2, 1>}, {transform_indices = @transform_3, window_bounds = array<i64: 2, 8>}]} {
    %c0 = arith.constant 0 : index
    %c0_0 = arith.constant 0 : index
    %0 = vector.load %arg2[%c0, %c0_0] : memref<2x32xf32, #tpu.memory_space<vmem>>, vector<2x32xf32>
    %c0_1 = arith.constant 0 : index
    %c0_2 = arith.constant 0 : index
    %1 = vector.load %arg1[%c0_1, %c0_2] : memref<8x32xf32, #tpu.memory_space<vmem>>, vector<8x32xf32>
    %cst = arith.constant dense<0.000000e+00> : vector<2x8xf32>
    %2 = tpu.matmul %0, %1, %cst {dimension_numbers = #tpu.dot_dimension_numbers<[1], [1], [0], [0], [0, 0, 1, 0], [], []>} : vector<2x32xf32>, vector<8x32xf32>, vector<2x8xf32> -> vector<2x8xf32>
    %c0_3 = arith.constant 0 : index
    %c0_4 = arith.constant 0 : index
    %3 = vector.load %arg3[%c0_3, %c0_4] : memref<2x1xf32, #tpu.memory_space<vmem>>, vector<2x1xf32>
    %4 = vector.broadcast %3 : vector<2x1xf32> to vector<2x8xf32>
    %5 = arith.addf %2, %4 : vector<2x8xf32>
    %c0_5 = arith.constant 0 : index
    %c0_6 = arith.constant 0 : index
    %6 = vector.load %arg4[%c0_5, %c0_6] : memref<2x8xf32, #tpu.memory_space<vmem>>, vector<2x8xf32>
    tpu.vector_store %arg4[%c0_5, %c0_6], %5 {strides = array<i32>} : memref<2x8xf32, #tpu.memory_space<vmem>>, vector<2x8xf32>,
    return
  }
  func.func @transform_0(%arg0: i32) -> (i32, i32) {
    %c0_i32 = arith.constant 0 : i32
    %c0_i32_0 = arith.constant 0 : i32
    return %arg0, %c0_i32 : i32, i32
  }
  func.func @transform_1(%arg0: i32) -> (i32, i32) {
    %c0_i32 = arith.constant 0 : i32
    %c0_i32_0 = arith.constant 0 : i32
    %c0_i32_1 = arith.constant 0 : i32
    return %c0_i32, %c0_i32_0 : i32, i32
  }
  func.func @transform_2(%arg0: i32) -> (i32, i32) {
    %c0_i32 = arith.constant 0 : i32
    %c0_i32_0 = arith.constant 0 : i32
    %c0_i32_1 = arith.constant 0 : i32
    return %c0_i32, %c0_i32_0 : i32, i32
  }
  func.func @transform_3(%arg0: i32) -> (i32, i32) {
    %c0_i32 = arith.constant 0 : i32
    %c0_i32_0 = arith.constant 0 : i32
    return %c0_i32, %arg0 : i32, i32
  }
}

</mosaic_0001>

<llo_original>
// kernel: tpu_custom_call.1
$region0: #{tpu_custom_call.1}
  #allocation0 [shape = 'u32[]', space=smem, size = 0x4, offset = 0x4, fixed_abs, tag = 'smem constant byte address 0x4 - core index']
  #allocation1 [shape = 'u32[72,128]{1,0:T(1,128)}', space=vmem, size = 0x9000, scoped, tag = 'internal scratch']
  %s0 = inlined_call_operand.hbm [shape: f32[8,32], index: 0, kind: input, shape index: {}]
  %s1 = inlined_call_operand.vmem [shape: f32[2,32], index: 1, kind: input, shape index: {}]
  %s2 = inlined_call_operand.vmem [shape: f32[2,1], index: 2, kind: input, shape index: {}]
  %s3 = inlined_call_operand.hbm [shape: f32[2,8], index: 3, kind: output, shape index: {}]
  %s4 = sld [smem:[#allocation0]]
  $region26: #{tpu_custom_call.1} parent=0
    _
  %s6 = ssub.s32 1, %s4
  %s7 = scalar_select 0, %s6, %s4
  $region1: #{tpu_custom_call.1} parent=0
    #allocation2 [shape = 'u8[4096]{0}', space=vmem, size = 0x1000, scoped, tag = 'input window, operand 0, single buffered']
    #allocation3 [shape = 's32[1]{0}', space=sflag, size = 0x4, scoped, tag = 'scoped memory for tpu_custom_call.1']
    #allocation4 [shape = 's32[1]{0}', space=sflag, size = 0x4, scoped, tag = 'scoped memory for tpu_custom_call.1']
    #allocation5 [shape = 'u8[1024]{0}', space=vmem, size = 0x400, scoped, tag = 'output window, operand 0, single buffered']
    %8 = vsyncpa [#allocation3], 0
    %9 = vsyncpa [#allocation4], 0
    // Predicated region
    $region2: #{tpu_custom_call.1} parent=1 // pred_check
      _
    $region3: #{tpu_custom_call.1} parent=1 // pred_check_branch
      %11 = sbr.rel (0) target = $region5
    $region4: #{tpu_custom_call.1} parent=1 // pred_region
      %13 = vsyncadd [#allocation3], 0
      %s15 = sshll.u32 %s0, 4
      %s16 = int_to_ptr.hbm [resolvable:$true] %s15
      %s17 = sshll.u32 [#allocation2], 4
      %s18 = int_to_ptr.vmem [resolvable:$true] %s17
      %20 = dma.hbm_to_vmem [thread:$0]  %s16, 128, %s18, [#allocation3]
    $region5: #{tpu_custom_call.1} parent=1 // pred_fallthru
      _
    // Predicated region
    $region6: #{tpu_custom_call.1} parent=1 // pred_check
      _
    $region7: #{tpu_custom_call.1} parent=1 // pred_check_branch
      %22 = sbr.rel (0) target = $region9
    $region8: #{tpu_custom_call.1} parent=1 // pred_region
      _
    $region9: #{tpu_custom_call.1} parent=1 // pred_fallthru
      _
    // Predicated region
    $region10: #{tpu_custom_call.1} parent=1 // pred_check
      _
    $region11: #{tpu_custom_call.1} parent=1 // pred_check_branch
      %24 = sbr.rel (0) target = $region13
    $region12: #{tpu_custom_call.1} parent=1 // pred_region
      _
    $region13: #{tpu_custom_call.1} parent=1 // pred_fallthru
      _
    // Predicated region
    $region14: #{tpu_custom_call.1} parent=1 // pred_check
      _
    $region15: #{tpu_custom_call.1} parent=1 // pred_check_branch
      %26 = sbr.rel (0) target = $region17
    $region16: #{tpu_custom_call.1} parent=1 // pred_region
      %28 = dma.done [#allocation3], 128
    $region17: #{tpu_custom_call.1} parent=1 // pred_fallthru
      _
    %v29 = vld [vmem:[%s1] sm:$0x3]
    %v30 = vld [vmem:[#allocation2] sm:$0xff]
    %v31 = vld [vmem:[%s2] sm:$0x3]
    %33 = vset.pattern.permute.xlu0 0
    %34 = vperm.xlu0 %33, %v31
    %v35 = vpop.permute.xlu0 %34
    %vm37 = vcmask 261120
    %v39 = vsel %vm37, %v29, 0
    %v42 = vsel %vm37, %v30, 0
    %44 = vmatpush.xpose.msra.mxu0 0.0
    %45 = vmatpush.xpose.msra.mxu0 0.0
    %46 = vmatpush.xpose.msra.mxu0 0.0
    %47 = vmatpush.xpose.msra.mxu0 0.0
    %48 = vmatpush.xpose.msra.mxu0 0.0
    %49 = vmatpush.xpose.msra.mxu0 0.0
    %50 = vmatpush.xpose.msra.mxu0 0.0
    %51 = vmatpush.xpose.msra.mxu0 0.0
    %52 = vmatpush.xpose.msra.mxu0 0.0
    %53 = vmatpush.xpose.msra.mxu0 0.0
    %54 = vmatpush.xpose.msra.mxu0 0.0
    %55 = vmatpush.xpose.msra.mxu0 0.0
    %56 = vmatpush.xpose.msra.mxu0 0.0
    %57 = vmatpush.xpose.msra.mxu0 0.0
    %58 = vmatpush.xpose.msra.mxu0 0.0
    %59 = vmatpush.xpose.msra.mxu0 %v42
    %60 = vmatmul.f32.gmra.mxu0 %v39
    %v61 = vpop.f32.mrf.mxu0
    %v62 = vadd.f32 %v35, %v61
    %63 = vdwg.mxu0
    %vm64 = vcmask 58368
    %65 = vst.msk [vmem:[#allocation5] sm:$0x3] %vm64, %v62
    // Predicated region
    $region18: #{tpu_custom_call.1} parent=1 // pred_check
      _
    $region19: #{tpu_custom_call.1} parent=1 // pred_check_branch
      %67 = sbr.rel (0) target = $region21
    $region20: #{tpu_custom_call.1} parent=1 // pred_region
      %69 = vsyncadd [#allocation4], 0
      %s71 = sshll.u32 [#allocation5], 4
      %s72 = int_to_ptr.vmem [resolvable:$true] %s71
      %s73 = sshll.u32 %s3, 4
      %s74 = int_to_ptr.hbm [resolvable:$true] %s73
      %76 = dma.vmem_to_hbm [thread:$0]  %s72, 32, %s74, [#allocation4]
    $region21: #{tpu_custom_call.1} parent=1 // pred_fallthru
      _
    // Predicated region
    $region22: #{tpu_custom_call.1} parent=1 // pred_check
      _
    $region23: #{tpu_custom_call.1} parent=1 // pred_check_branch
      %78 = sbr.rel (0) target = $region25
    $region24: #{tpu_custom_call.1} parent=1 // pred_region
      %80 = dma.done [#allocation4], 32
    $region25: #{tpu_custom_call.1} parent=1 // pred_fallthru
      _
    %81 = vsyncpa [#allocation3], 1
    %82 = vsyncpa [#allocation4], 1

</llo_original>
